<compile_context>
chip_gen: v7x
topology: tpu7x:2x2x1
jax: 0.10.0
libtpu: 0.0.40
codegen_flags: <defaults>
</compile_context>

<pallas_src>
import functools

import jax
import jax.numpy as jnp
from jax.experimental import pallas as pl
from jax.experimental.pallas import tpu as pltpu


def _cdiv(a, b):
    return -(-a // b)


def _round_up(a, b):
    return _cdiv(a, b) * b


def _soft_ce_kernel(tgt_ref, x_ref, out_ref, m_sc, l_sc, s_sc, *,
                    w_tgt, w_off, n_rows, n_classes, tile_n, tile_c,
                    mask_classes):
    """One (row-tile, class-tile) step of smoothed CE with online logsumexp.

    tgt_ref: (tile_n, 1) int32 target class per row (VMEM)
    x_ref:   (tile_n, tile_c) logits tile, native dtype (VMEM)
    out_ref: (tile_n, 1) f32 per-row loss (written at the last class step)
    m_sc / l_sc / s_sc: (tile_n, 1) f32 running max / sum(exp) / sum(w*x)
    """
    i = pl.program_id(0)
    ci = pl.program_id(1)

    @pl.when(ci == 0)
    def _():
        m_sc[...] = jnp.full_like(m_sc, -jnp.inf)
        l_sc[...] = jnp.zeros_like(l_sc)
        s_sc[...] = jnp.zeros_like(s_sc)

    xv = x_ref[...]                                    # (tn, tc) native dtype
    tn, tc = xv.shape
    tgt = tgt_ref[...]                                 # (tn, 1) int32
    cols = jax.lax.broadcasted_iota(jnp.int32, (tn, tc), 1) + ci * tile_c

    # Smoothed one-hot is never materialized.  Fused form (weights sum to 1):
    #   row_loss = lse - sum_c w_c * x_c
    w = jnp.where(cols == tgt, jnp.float32(w_tgt), jnp.float32(w_off))

    if mask_classes:
        valid = cols < n_classes
        x_for_max = jnp.where(valid, xv, jnp.array(-jnp.inf, dtype=xv.dtype))
    else:
        x_for_max = xv

    # Row max in native dtype (exact); cast to f32 only inside exp/accumulate.
    m_blk = jnp.max(x_for_max, axis=1, keepdims=True).astype(jnp.float32)
    m_prev = m_sc[...]
    m_new = jnp.maximum(m_prev, m_blk)

    # exp of masked classes is exp(-inf) == 0, so they drop out of the sum.
    p_sum = jnp.sum(jnp.exp(x_for_max.astype(jnp.float32) - m_new),
                    axis=1, keepdims=True)

    wx = w * xv.astype(jnp.float32)
    if mask_classes:
        wx = jnp.where(valid, wx, 0.0)
    s_blk = jnp.sum(wx, axis=1, keepdims=True)

    alpha = jnp.exp(m_prev - m_new)                    # 0 at ci == 0
    l_sc[...] = alpha * l_sc[...] + p_sum
    s_sc[...] = s_sc[...] + s_blk
    m_sc[...] = m_new

    @pl.when(ci == pl.num_programs(1) - 1)
    def _():
        lse = m_sc[...] + jnp.log(l_sc[...])
        row_loss = lse - s_sc[...]
        # Rows past N (grid padding) -> 0.  The select does not propagate
        # NaN/Inf produced by undefined logits in the padded rows.
        rows = jax.lax.broadcasted_iota(jnp.int32, (tn, 1), 0) + i * tile_n
        out_ref[...] = jnp.where(rows < n_rows, row_loss, 0.0)


def _tpu_vmem_bytes():
    try:
        return int(pltpu.get_tpu_info().vmem_capacity_bytes)
    except Exception:
        return 64 * 1024 * 1024      # conservative: v7x per-TensorCore VMEM


_MAX_TILE_N = 2048                   # review: allow 1024-2048 row tiles
_MIN_TILE_N_BEFORE_SPLIT = 128       # below this, split the class axis
_MAX_TILE_C = 8192


def _pick_tiles(n, c, dtype, budget_bytes):
    """Pick (tile_n, tile_c) so the full working set fits the VMEM budget."""
    itemsize = jnp.dtype(dtype).itemsize
    sub = max(8, 32 // itemsize)     # sublane packing: f32 -> 8, bf16 -> 16
    # Per-(row, class) bytes: 2x double-buffered native tile + ~3x f32
    # intermediates (exp pass / weighted product / cast).
    bpe = 2 * itemsize + 3 * 4

    def rows_for(tc):
        r = budget_bytes // (bpe * tc)
        r = min(r, _MAX_TILE_N, _round_up(n, sub))
        return max(sub, (r // sub) * sub)

    tile_c = c
    tile_n = rows_for(c)
    if c > 256 and tile_n < _MIN_TILE_N_BEFORE_SPLIT:
        # Vocab-scale C: split the class axis; the kernel's online logsumexp
        # makes the working set independent of C.
        tc = (budget_bytes // (bpe * _MIN_TILE_N_BEFORE_SPLIT)) // 128 * 128
        tile_c = int(min(max(128, tc), _MAX_TILE_C, _round_up(c, 128)))
        tile_n = min(rows_for(tile_c), 512)
        tile_n = max(sub, (tile_n // sub) * sub)

    # Keep >= 2 row tiles so the "parallel" row axis can shard across v7x's
    # two TensorCores (cost on 1-TC chips: one extra ~0.35us grid step).
    if tile_n >= n and n > sub:
        tile_n = max(sub, _round_up(_cdiv(n, 2), sub))
    return tile_n, tile_c


def soft_cross_entropy_loss(logits, target, ep=0.2, reduction="mean",
                            tile_n=None, tile_c=None, vmem_limit_bytes=None):
    """logits: (N, C) float, target: (N,) int -> scalar (or (N,) for 'none')."""
    n, c = logits.shape

    if vmem_limit_bytes is None:
        phys = _tpu_vmem_bytes()
        # ~0.65x physical: ~41 MiB on v7x (64 MiB/TC), ~83 MiB on v5e/v6e.
        vmem_limit_bytes = int(min(96 * 2 ** 20,
                                   max(32 * 2 ** 20, int(phys * 0.65))))

    auto_n, auto_c = _pick_tiles(n, c, logits.dtype,
                                 budget_bytes=vmem_limit_bytes // 2)
    if tile_n is None:
        tile_n = auto_n
    if tile_c is None:
        tile_c = auto_c
    if tile_c >= c:
        tile_c = c
    elif tile_c % 128 != 0:
        raise ValueError("tile_c must be a multiple of 128 or >= C")

    n_grid = _cdiv(n, tile_n)
    c_grid = _cdiv(c, tile_c)
    n_pad = n_grid * tile_n
    mask_classes = (c_grid * tile_c != c)

    w_off = (ep / (c - 1)) if c > 1 else 0.0
    kernel = functools.partial(
        _soft_ce_kernel,
        w_tgt=float(1.0 - ep), w_off=float(w_off),
        n_rows=n, n_classes=c, tile_n=tile_n, tile_c=tile_c,
        mask_classes=mask_classes)

    tgt2d = target.astype(jnp.int32).reshape(n, 1)
    itemsize = jnp.dtype(logits.dtype).itemsize

    row_losses = pl.pallas_call(
        kernel,
        out_shape=jax.ShapeDtypeStruct((n_pad, 1), jnp.float32),
        grid_spec=pltpu.PrefetchScalarGridSpec(
            num_scalar_prefetch=0,
            grid=(n_grid, c_grid),
            in_specs=[
                pl.BlockSpec((tile_n, 1), lambda i, ci: (i, 0)),        # targets
                pl.BlockSpec((tile_n, tile_c), lambda i, ci: (i, ci)),  # logits
            ],
            out_specs=pl.BlockSpec((tile_n, 1), lambda i, ci: (i, 0)),
            scratch_shapes=[pltpu.VMEM((tile_n, 1), jnp.float32)] * 3,
        ),
        compiler_params=pltpu.CompilerParams(
            dimension_semantics=("parallel", "arbitrary"),
            vmem_limit_bytes=int(vmem_limit_bytes),
        ),
        cost_estimate=pl.CostEstimate(
            flops=int(5 * n * c),
            transcendentals=int(n * c),
            bytes_accessed=int(n * c * itemsize + 8 * n),
        ),
    )(tgt2d, logits)

    if reduction == "mean":
        return jnp.sum(row_losses) / jnp.float32(n)    # padded rows are 0
    elif reduction == "sum":
        return jnp.sum(row_losses)
    else:  # 'none'
        return row_losses[:n, 0]


def _reference(logits, target, ep=0.2, reduction="mean"):
    n, c = logits.shape
    x = logits.astype(jnp.float32)
    log_prob = jax.nn.log_softmax(x, axis=1)
    onehot = jnp.full((n, c), ep / (c - 1), dtype=jnp.float32)
    onehot = onehot.at[jnp.arange(n), target].set(1.0 - ep)
    loss = -jnp.sum(onehot * log_prob, axis=1)
    if reduction == "mean":
        return jnp.mean(loss)
    if reduction == "sum":
        return jnp.sum(loss)
    return loss


if __name__ == "__main__":
    key = jax.random.PRNGKey(0)
    ks = jax.random.split(key, 8)

    # 1) f32, small C (single class block), auto tiling.
    N, C = 64, 16
    logits = jax.random.normal(ks[0], (N, C), dtype=jnp.float32)
    target = jax.random.randint(ks[1], (N,), 0, C, dtype=jnp.int32)
    loss = soft_cross_entropy_loss(logits, target, ep=0.2)
    jax.block_until_ready(loss)
    ref = _reference(logits, target, ep=0.2)
    assert jnp.allclose(loss, ref, atol=1e-5, rtol=1e-5), (loss, ref)

    # 1b) 'sum' and 'none' reductions.
    loss_s = soft_cross_entropy_loss(logits, target, ep=0.2, reduction="sum")
    ref_s = _reference(logits, target, ep=0.2, reduction="sum")
    assert jnp.allclose(loss_s, ref_s, atol=1e-4, rtol=1e-5), (loss_s, ref_s)
    loss_n = soft_cross_entropy_loss(logits, target, ep=0.2, reduction="none")
    ref_n = _reference(logits, target, ep=0.2, reduction="none")
    assert loss_n.shape == (N,)
    assert jnp.allclose(loss_n, ref_n, atol=1e-5, rtol=1e-5)

    # 2) f32, N not divisible by tile_n (padded last row tile is masked).
    N2, C2 = 52, 24
    logits2 = jax.random.normal(ks[2], (N2, C2), dtype=jnp.float32)
    target2 = jax.random.randint(ks[3], (N2,), 0, C2, dtype=jnp.int32)
    loss2 = soft_cross_entropy_loss(logits2, target2, ep=0.2, tile_n=16)
    jax.block_until_ready(loss2)
    ref2 = _reference(logits2, target2, ep=0.2)
    assert jnp.allclose(loss2, ref2, atol=1e-5, rtol=1e-5), (loss2, ref2)

    # 3) bf16 logits fed in native dtype (cast happens inside the kernel).
    loss3 = soft_cross_entropy_loss(logits.astype(jnp.bfloat16), target, ep=0.2)
    jax.block_until_ready(loss3)
    ref3 = _reference(logits.astype(jnp.bfloat16), target, ep=0.2)
    assert jnp.allclose(loss3, ref3, atol=1e-4, rtol=1e-4), (loss3, ref3)

    # 4) class-split path (c_grid > 1, online logsumexp), C % tile_c == 0.
    N4, C4 = 40, 384
    logits4 = jax.random.normal(ks[4], (N4, C4), dtype=jnp.float32)
    target4 = jax.random.randint(ks[5], (N4,), 0, C4, dtype=jnp.int32)
    loss4 = soft_cross_entropy_loss(logits4, target4, ep=0.2,
                                    tile_n=16, tile_c=128)
    jax.block_until_ready(loss4)
    ref4 = _reference(logits4, target4, ep=0.2)
    assert jnp.allclose(loss4, ref4, atol=2e-5, rtol=1e-5), (loss4, ref4)

    # 5) class-split with a padded last class block (C % tile_c != 0 -> mask).
    N5, C5 = 24, 200
    logits5 = jax.random.normal(ks[6], (N5, C5), dtype=jnp.float32)
    target5 = jax.random.randint(ks[7], (N5,), 0, C5, dtype=jnp.int32)
    loss5 = soft_cross_entropy_loss(logits5, target5, ep=0.2,
                                    tile_n=8, tile_c=128)
    jax.block_until_ready(loss5)
    ref5 = _reference(logits5, target5, ep=0.2)
    assert jnp.allclose(loss5, ref5, atol=2e-5, rtol=1e-5), (loss5, ref5)

    print("KERNEL_OK")
</pallas_src>

<mosaic_0001>
module attributes {stable_mosaic.version = 11 : i64} {
  func.func @_soft_ce_kernel(%arg0: i32, %arg1: i32, %arg2: memref<32x1xi32, #tpu.memory_space<vmem>>, %arg3: memref<32x16xf32, #tpu.memory_space<vmem>>, %arg4: memref<32x1xf32, #tpu.memory_space<vmem>>, %arg5: memref<32x1xf32, #tpu.memory_space<vmem>>, %arg6: memref<32x1xf32, #tpu.memory_space<vmem>>, %arg7: memref<32x1xf32, #tpu.memory_space<vmem>>) attributes {dimension_semantics = [#tpu.dimension_semantics<parallel>, #tpu.dimension_semantics<arbitrary>], iteration_bounds = array<i64: 2, 1>, scalar_prefetch = 0 : i64, scratch_operands = 3 : i64, tpu.core_type = #tpu.core_type<tc>, window_params = [{transform_indices = @transform_0, window_bounds = array<i64: 32, 1>}, {transform_indices = @transform_1, window_bounds = array<i64: 32, 16>}, {transform_indices = @transform_2, window_bounds = array<i64: 32, 1>}]} {
    %c0_i32 = arith.constant 0 : i32
    %0 = arith.cmpi eq, %arg1, %c0_i32 : i32
    %1 = arith.extui %0 : i1 to i32
    %c0_i32_0 = arith.constant 0 : i32
    %2 = arith.cmpi ne, %1, %c0_i32_0 : i32
    scf.if %2 {
      %cst_22 = arith.constant 0xFF800000 : f32
      %39 = vector.broadcast %cst_22 : f32 to vector<32x1xf32>
      %c0_23 = arith.constant 0 : index
      %c0_24 = arith.constant 0 : index
      %40 = vector.load %arg5[%c0_23, %c0_24] : memref<32x1xf32, #tpu.memory_space<vmem>>, vector<32x1xf32>
      tpu.vector_store %arg5[%c0_23, %c0_24], %39 {strides = array<i32>} : memref<32x1xf32, #tpu.memory_space<vmem>>, vector<32x1xf32>,
      %cst_25 = arith.constant 0.000000e+00 : f32
      %41 = vector.broadcast %cst_25 : f32 to vector<32x1xf32>
      %c0_26 = arith.constant 0 : index
      %c0_27 = arith.constant 0 : index
      %42 = vector.load %arg6[%c0_26, %c0_27] : memref<32x1xf32, #tpu.memory_space<vmem>>, vector<32x1xf32>
      tpu.vector_store %arg6[%c0_26, %c0_27], %41 {strides = array<i32>} : memref<32x1xf32, #tpu.memory_space<vmem>>, vector<32x1xf32>,
      %cst_28 = arith.constant 0.000000e+00 : f32
      %43 = vector.broadcast %cst_28 : f32 to vector<32x1xf32>
      %c0_29 = arith.constant 0 : index
      %c0_30 = arith.constant 0 : index
      %44 = vector.load %arg7[%c0_29, %c0_30] : memref<32x1xf32, #tpu.memory_space<vmem>>, vector<32x1xf32>
      tpu.vector_store %arg7[%c0_29, %c0_30], %43 {strides = array<i32>} : memref<32x1xf32, #tpu.memory_space<vmem>>, vector<32x1xf32>,
    } else {
    }
    %c0 = arith.constant 0 : index
    %c0_1 = arith.constant 0 : index
    %3 = vector.load %arg3[%c0, %c0_1] : memref<32x16xf32, #tpu.memory_space<vmem>>, vector<32x16xf32>
    %c0_2 = arith.constant 0 : index
    %c0_3 = arith.constant 0 : index
    %4 = vector.load %arg2[%c0_2, %c0_3] : memref<32x1xi32, #tpu.memory_space<vmem>>, vector<32x1xi32>
    %5 = tpu.iota {dimensions = array<i32: 1>} : vector<32x16xi32>
    %c16_i32 = arith.constant 16 : i32
    %6 = arith.muli %arg1, %c16_i32 : i32
    %7 = vector.broadcast %6 : i32 to vector<32x16xi32>
    %8 = arith.addi %5, %7 : vector<32x16xi32>
    %9 = vector.broadcast %4 : vector<32x1xi32> to vector<32x16xi32>
    %10 = arith.cmpi eq, %8, %9 : vector<32x16xi32>
    %cst = arith.constant 8.000000e-01 : f32
    %cst_4 = arith.constant 0.0133333337 : f32
    %11 = vector.broadcast %cst : f32 to vector<32x16xf32>
    %12 = vector.broadcast %cst_4 : f32 to vector<32x16xf32>
    %13 = arith.select %10, %11, %12 : vector<32x16xi1>, vector<32x16xf32>
    %cst_5 = arith.constant dense<0xFF800000> : vector<32xf32>
    %14 = vector.multi_reduction <maximumf>, %3, %cst_5 [1] : vector<32x16xf32> to vector<32xf32>
    %15 = vector.shape_cast %14 : vector<32xf32> to vector<32x1xf32>
    %c0_6 = arith.constant 0 : index
    %c0_7 = arith.constant 0 : index
    %16 = vector.load %arg5[%c0_6, %c0_7] : memref<32x1xf32, #tpu.memory_space<vmem>>, vector<32x1xf32>
    %17 = arith.maximumf %16, %15 : vector<32x1xf32>
    %18 = vector.broadcast %17 : vector<32x1xf32> to vector<32x16xf32>
    %19 = arith.subf %3, %18 : vector<32x16xf32>
    %20 = math.exp %19 : vector<32x16xf32>
    %cst_8 = arith.constant dense<0.000000e+00> : vector<32xf32>
    %21 = vector.multi_reduction <add>, %20, %cst_8 [1] : vector<32x16xf32> to vector<32xf32>
    %22 = vector.shape_cast %21 : vector<32xf32> to vector<32x1xf32>
    %23 = arith.mulf %13, %3 : vector<32x16xf32>
    %cst_9 = arith.constant dense<0.000000e+00> : vector<32xf32>
    %24 = vector.multi_reduction <add>, %23, %cst_9 [1] : vector<32x16xf32> to vector<32xf32>
    %25 = vector.shape_cast %24 : vector<32xf32> to vector<32x1xf32>
    %26 = arith.subf %16, %17 : vector<32x1xf32>
    %27 = math.exp %26 : vector<32x1xf32>
    %c0_10 = arith.constant 0 : index
    %c0_11 = arith.constant 0 : index
    %28 = vector.load %arg6[%c0_10, %c0_11] : memref<32x1xf32, #tpu.memory_space<vmem>>, vector<32x1xf32>
    %29 = arith.mulf %27, %28 : vector<32x1xf32>
    %30 = arith.addf %29, %22 : vector<32x1xf32>
    %c0_12 = arith.constant 0 : index
    %c0_13 = arith.constant 0 : index
    %31 = vector.load %arg6[%c0_12, %c0_13] : memref<32x1xf32, #tpu.memory_space<vmem>>, vector<32x1xf32>
    tpu.vector_store %arg6[%c0_12, %c0_13], %30 {strides = array<i32>} : memref<32x1xf32, #tpu.memory_space<vmem>>, vector<32x1xf32>,
    %c0_14 = arith.constant 0 : index
    %c0_15 = arith.constant 0 : index
    %32 = vector.load %arg7[%c0_14, %c0_15] : memref<32x1xf32, #tpu.memory_space<vmem>>, vector<32x1xf32>
    %33 = arith.addf %32, %25 : vector<32x1xf32>
    %c0_16 = arith.constant 0 : index
    %c0_17 = arith.constant 0 : index
    %34 = vector.load %arg7[%c0_16, %c0_17] : memref<32x1xf32, #tpu.memory_space<vmem>>, vector<32x1xf32>
    tpu.vector_store %arg7[%c0_16, %c0_17], %33 {strides = array<i32>} : memref<32x1xf32, #tpu.memory_space<vmem>>, vector<32x1xf32>,
    %c0_18 = arith.constant 0 : index
    %c0_19 = arith.constant 0 : index
    %35 = vector.load %arg5[%c0_18, %c0_19] : memref<32x1xf32, #tpu.memory_space<vmem>>, vector<32x1xf32>
    tpu.vector_store %arg5[%c0_18, %c0_19], %17 {strides = array<i32>} : memref<32x1xf32, #tpu.memory_space<vmem>>, vector<32x1xf32>,
    %c0_i32_20 = arith.constant 0 : i32
    %36 = arith.cmpi eq, %arg1, %c0_i32_20 : i32
    %37 = arith.extui %36 : i1 to i32
    %c0_i32_21 = arith.constant 0 : i32
    %38 = arith.cmpi ne, %37, %c0_i32_21 : i32
    scf.if %38 {
      %c0_22 = arith.constant 0 : index
      %c0_23 = arith.constant 0 : index
      %39 = vector.load %arg5[%c0_22, %c0_23] : memref<32x1xf32, #tpu.memory_space<vmem>>, vector<32x1xf32>
      %c0_24 = arith.constant 0 : index
      %c0_25 = arith.constant 0 : index
      %40 = vector.load %arg6[%c0_24, %c0_25] : memref<32x1xf32, #tpu.memory_space<vmem>>, vector<32x1xf32>
      %41 = math.log %40 : vector<32x1xf32>
      %42 = arith.addf %39, %41 : vector<32x1xf32>
      %c0_26 = arith.constant 0 : index
      %c0_27 = arith.constant 0 : index
      %43 = vector.load %arg7[%c0_26, %c0_27] : memref<32x1xf32, #tpu.memory_space<vmem>>, vector<32x1xf32>
      %44 = arith.subf %42, %43 : vector<32x1xf32>
      %45 = tpu.iota {dimensions = array<i32: 0>} : vector<32x1xi32>
      %c32_i32 = arith.constant 32 : i32
      %46 = arith.muli %arg0, %c32_i32 : i32
      %47 = vector.broadcast %46 : i32 to vector<32x1xi32>
      %48 = arith.addi %45, %47 : vector<32x1xi32>
      %c64_i32 = arith.constant 64 : i32
      %49 = vector.broadcast %c64_i32 : i32 to vector<32x1xi32>
      %50 = arith.cmpi slt, %48, %49 : vector<32x1xi32>
      %cst_28 = arith.constant 0.000000e+00 : f32
      %51 = vector.broadcast %cst_28 : f32 to vector<32x1xf32>
      %52 = arith.select %50, %44, %51 : vector<32x1xi1>, vector<32x1xf32>
      %c0_29 = arith.constant 0 : index
      %c0_30 = arith.constant 0 : index
      %53 = vector.load %arg4[%c0_29, %c0_30] : memref<32x1xf32, #tpu.memory_space<vmem>>, vector<32x1xf32>
      tpu.vector_store %arg4[%c0_29, %c0_30], %52 {strides = array<i32>} : memref<32x1xf32, #tpu.memory_space<vmem>>, vector<32x1xf32>,
    } else {
    }
    return
  }
  func.func @transform_0(%arg0: i32, %arg1: i32) -> (i32, i32) {
    %c0_i32 = arith.constant 0 : i32
    %c0_i32_0 = arith.constant 0 : i32
    return %arg0, %c0_i32 : i32, i32
  }
  func.func @transform_1(%arg0: i32, %arg1: i32) -> (i32, i32) {
    %c0_i32 = arith.constant 0 : i32
    return %arg0, %arg1 : i32, i32
  }
  func.func @transform_2(%arg0: i32, %arg1: i32) -> (i32, i32) {
    %c0_i32 = arith.constant 0 : i32
    %c0_i32_0 = arith.constant 0 : i32
    return %arg0, %c0_i32 : i32, i32
  }
}

</mosaic_0001>

<llo_original>
// kernel: tpu_custom_call.1
$region0: #{tpu_custom_call.1}
  #allocation0 [shape = 'u32[]', space=smem, size = 0x4, offset = 0x4, fixed_abs, tag = 'smem constant byte address 0x4 - core index']
  #allocation1 [shape = 'u32[144,128]{1,0:T(1,128)}', space=vmem, size = 0x12000, scoped, tag = 'internal scratch']
  #allocation2 [shape = 'f32[32,1]{1,0:T(8,128)}', space=vmem, size = 0x4000, scoped, tag = 'scratch operand']
  #allocation3 [shape = 'f32[32,1]{1,0:T(8,128)}', space=vmem, size = 0x4000, scoped, tag = 'scratch operand']
  #allocation4 [shape = 'f32[32,1]{1,0:T(8,128)}', space=vmem, size = 0x4000, scoped, tag = 'scratch operand']
  %s0 = inlined_call_operand.vmem [shape: s32[64,1], index: 0, kind: input, shape index: {}]
  %s1 = inlined_call_operand.vmem [shape: f32[64,16], index: 1, kind: input, shape index: {}]
  %s2 = inlined_call_operand.vmem [shape: f32[64,1], index: 2, kind: output, shape index: {}]
  %s3 = sld [smem:[#allocation0]]
  $region49: #{tpu_custom_call.1} parent=0
    _
  %s5 = ssub.s32 1, %s3
  %s6 = scalar_select 0, %s5, %s3
  loop: start=0, step=1, limit=4
  $region2: #{tpu_custom_call.1} parent=0 // loop_pre_header
    _
  $region3: #{tpu_custom_call.1} parent=0 // loop_header
    %s8 = sphi 0, %s12
    %p9 = scmp.ge.s32.totalorder %s8, 4
    %s15 = sphi 0, %s27
    %s16 = sphi 0, %s23
    %s17 = sphi 0, %s15
    %s18 = sphi 0, %s16
    %s19 = sphi 0, %s17
    %s20 = sphi 0, %s18
    %s30 = sphi 0, %s32
    %s33 = sphi 0, %s30
    %s34 = sphi 0, %s33
    %s50 = sphi 0, %s34
    %s58 = sphi 0, %s60
    %s61 = sphi 0, %s58
    %s62 = sphi 0, %s61
    %s78 = sphi 0, %s62
    %s84 = sphi 0, %s86
    %s87 = sphi 0, %s84
    %s88 = sphi 0, %s87
    %s104 = sphi 0, %s88
  $region4: #{tpu_custom_call.1} parent=0 // loop_header_branch
    %11 = sbr.rel (%p9) target = $region8
  $region5: #{tpu_custom_call.1} parent=0 // loop_body
    %s13 = ssub.s32 %s8, 1
    %s14 = ssub.s32 %s8, 2
    %s21 = sadd.s32 1, %s16
    %p22 = scmp.ge.s32.totalorder %s21, 1
    %s23 = scalar_select %p22, 0, %s21
    %s24 = sadd.s32 1, %s15
    %s25 = scalar_select %p22, %s24, %s15
    %p26 = scmp.ge.s32.totalorder %s25, 2
    %s27 = scalar_select %p26, 0, %s25
    %s28 = ssub.s32 %s15, %s27
    %p29 = scmp.eq.s32.totalorder %s28, 0
    %s31 = sadd.s32 %s30, 1
    %s32 = scalar_select %p29, %s30, %s31
    %p35 = pneg %p29
    %p36 = scmp.eq.s32.totalorder %s8, 1
    %p37 = por %p35, %p36
    %p38 = scmp.ne.s32.totalorder %s30, %s33
    %p39 = scmp.eq.s32.totalorder %s8, 0
    %p40 = por %p38, %p39
    %p41 = scmp.ne.s32.totalorder %s30, %s33
    %p42 = scmp.eq.s32.totalorder %s13, 1
    %p43 = por %p41, %p42
    %p44 = scmp.ne.s32.totalorder %s33, %s34
    %p45 = scmp.eq.s32.totalorder %s13, 0
    %p46 = por %p44, %p45
    %p47 = scmp.ne.s32.totalorder %s33, %s34
    %p48 = scmp.eq.s32.totalorder %s14, 1
    %p49 = por %p47, %p48
    %p51 = scmp.ne.s32.totalorder %s34, %s50
    %p52 = scmp.eq.s32.totalorder %s14, 0
    %p53 = por %p51, %p52
    %s54 = ssub.s32 %s15, %s27
    %s55 = ssub.s32 %s16, %s23
    %s56 = sor.u32 %s54, %s55
    %p57 = scmp.eq.s32.totalorder %s56, 0
    %s59 = sadd.s32 %s58, 1
    %s60 = scalar_select %p57, %s58, %s59
    %p63 = pneg %p57
    %p64 = scmp.eq.s32.totalorder %s8, 1
    %p65 = por %p63, %p64
    %p66 = scmp.ne.s32.totalorder %s58, %s61
    %p67 = scmp.eq.s32.totalorder %s8, 0
    %p68 = por %p66, %p67
    %p69 = scmp.ne.s32.totalorder %s58, %s61
    %p70 = scmp.eq.s32.totalorder %s13, 1
    %p71 = por %p69, %p70
    %p72 = scmp.ne.s32.totalorder %s61, %s62
    %p73 = scmp.eq.s32.totalorder %s13, 0
    %p74 = por %p72, %p73
    %p75 = scmp.ne.s32.totalorder %s61, %s62
    %p76 = scmp.eq.s32.totalorder %s14, 1
    %p77 = por %p75, %p76
    %p79 = scmp.ne.s32.totalorder %s62, %s78
    %p80 = scmp.eq.s32.totalorder %s14, 0
    %p81 = por %p79, %p80
    %s82 = ssub.s32 %s15, %s27
    %p83 = scmp.eq.s32.totalorder %s82, 0
    %s85 = sadd.s32 %s84, 1
    %s86 = scalar_select %p83, %s84, %s85
    %p89 = pneg %p83
    %p90 = scmp.eq.s32.totalorder %s8, 1
    %p91 = por %p89, %p90
    %p92 = scmp.ne.s32.totalorder %s84, %s87
    %p93 = scmp.eq.s32.totalorder %s8, 0
    %p94 = por %p92, %p93
    %p95 = scmp.ne.s32.totalorder %s84, %s87
    %p96 = scmp.eq.s32.totalorder %s13, 1
    %p97 = por %p95, %p96
    %p98 = scmp.ne.s32.totalorder %s87, %s88
    %p99 = scmp.eq.s32.totalorder %s13, 0
    %p100 = por %p98, %p99
    %p101 = scmp.ne.s32.totalorder %s87, %s88
    %p102 = scmp.eq.s32.totalorder %s14, 1
    %p103 = por %p101, %p102
    %p105 = scmp.ne.s32.totalorder %s88, %s104
    %p106 = scmp.eq.s32.totalorder %s14, 0
    %p107 = por %p105, %p106
    %p108 = scmp.le.s32.totalorder 1, %s8
    %p109 = scmp.lt.s32.totalorder %s8, 3
    %p110 = pnand %p108, %p109
    %p111 = pneg %p110
    // Predicated region
    $region9: #{tpu_custom_call.1} parent=5 // pred_check
      _
    $region10: #{tpu_custom_call.1} parent=5 // pred_check_branch
      %113 = sbr.rel (%p110) target = $region12
    $region11: #{tpu_custom_call.1} parent=5 // pred_region
      %s114 = ssub.s32 %s8, 1
    $region12: #{tpu_custom_call.1} parent=5 // pred_fallthru
      _
    %p115 = scmp.lt.s32.totalorder %s8, 2
    // Predicated region
    $region13: #{tpu_custom_call.1} parent=5 // pred_check
      %p116 = pneg %p115
    $region14: #{tpu_custom_call.1} parent=5 // pred_check_branch
      %118 = sbr.rel (%p116) target = $region16
    $region15: #{tpu_custom_call.1} parent=5 // pred_region
      // Predicated region
      $region17: #{tpu_custom_call.1} parent=15 // pred_check
        %p119 = pneg %p40
      $region18: #{tpu_custom_call.1} parent=15 // pred_check_branch
        %121 = sbr.rel (%p119) target = $region20
      $region19: #{tpu_custom_call.1} parent=15 // pred_region
        %s122 = smul.u32 4, %s15
        %p123 = scmp.lt.s32.totalorder %s122, 7
        %s124 = scalar_select %p123, %s122, 7
        %s125 = smul.addr %s124, 8
        %s126 = scalar_lea.vmem %s0, %s125
        %s127 = smul.u32 4, %s15
      $region20: #{tpu_custom_call.1} parent=15 // pred_fallthru
        _
      // Predicated region
      $region21: #{tpu_custom_call.1} parent=15 // pred_check
        %p128 = pneg %p68
      $region22: #{tpu_custom_call.1} parent=15 // pred_check_branch
        %130 = sbr.rel (%p128) target = $region24
      $region23: #{tpu_custom_call.1} parent=15 // pred_region
        %s131 = smul.u32 4, %s15
        %p132 = scmp.lt.s32.totalorder %s131, 7
        %s133 = scalar_select %p132, %s131, 7
        %p134 = scmp.lt.s32.totalorder %s16, 0
        %s135 = scalar_select %p134, %s16, 0
        %s136 = sadd.s32 %s135, %s133
        %s137 = smul.addr %s136, 8
        %s138 = scalar_lea.vmem %s1, %s137
        %s139 = smul.u32 4, %s15
      $region24: #{tpu_custom_call.1} parent=15 // pred_fallthru
        _
    $region16: #{tpu_custom_call.1} parent=5 // pred_fallthru
      _
    %p140 = scmp.le.s32.totalorder 1, %s8
    %p141 = scmp.lt.s32.totalorder %s8, 3
    %p142 = pnand %p140, %p141
    %p143 = pneg %p142
    // Predicated region
    $region25: #{tpu_custom_call.1} parent=5 // pred_check
      _
    $region26: #{tpu_custom_call.1} parent=5 // pred_check_branch
      %145 = sbr.rel (%p142) target = $region28
    $region27: #{tpu_custom_call.1} parent=5 // pred_region
      %s146 = ssub.s32 %s8, 1
      %s147 = smul.u32 4, %s17
      %p148 = scmp.lt.s32.totalorder %s147, 7
      %s149 = scalar_select %p148, %s147, 7
      %s150 = smul.addr %s149, 8
      %s151 = scalar_lea.vmem %s0, %s150
      %p152 = pneg %p46
      %p153 = pneg %p43
      %s154 = smul.u32 4, %s17
      %p155 = scmp.lt.s32.totalorder %s154, 7
      %s156 = scalar_select %p155, %s154, 7
      %p157 = scmp.lt.s32.totalorder %s18, 0
      %s158 = scalar_select %p157, %s18, 0
      %s159 = sadd.s32 %s158, %s156
      %s160 = smul.addr %s159, 8
      %s161 = scalar_lea.vmem %s1, %s160
      %p162 = pneg %p74
      %p163 = pneg %p71
      %p164 = pneg %p100
      %p165 = pneg %p97
      %s166 = smul.u32 4, %s17
      %p167 = scmp.lt.s32.totalorder %s166, 7
      %s168 = scalar_select %p167, %s166, 7
      %s169 = smul.addr %s168, 8
      %s170 = scalar_lea.vmem %s2, %s169
      %s171 = smul.u32 4, %s17
      %p172 = scmp.lt.s32.totalorder %s171, 7
      %s173 = scalar_select %p172, %s171, 7
      %s174 = smul.addr %s173, 8
      %s175 = scalar_lea.vmem %s0, %s174
      %s176 = smul.u32 4, %s17
      %s177 = smul.u32 4, %s17
      %p178 = scmp.lt.s32.totalorder %s177, 7
      %s179 = scalar_select %p178, %s177, 7
      %p180 = scmp.lt.s32.totalorder %s18, 0
      %s181 = scalar_select %p180, %s18, 0
      %s182 = sadd.s32 %s181, %s179
      %s183 = smul.addr %s182, 8
      %s184 = scalar_lea.vmem %s1, %s183
      %s185 = smul.u32 4, %s17
      %s186 = smul.u32 4, %s17
      %p187 = scmp.lt.s32.totalorder %s186, 7
      %s188 = scalar_select %p187, %s186, 7
      %s189 = smul.addr %s188, 8
      %s190 = scalar_lea.vmem %s2, %s189
      %s191 = smul.u32 4, %s17
      %p192 = scmp.eq.s32.totalorder %s18, 0
      // Predicated region
      $region29: #{tpu_custom_call.1} parent=27 // pred_check
        %p193 = pneg %p192
      $region30: #{tpu_custom_call.1} parent=27 // pred_check_branch
        %195 = sbr.rel (%p193) target = $region32
      $region31: #{tpu_custom_call.1} parent=27 // pred_region
        %vm196 = vcmask 7168
        %197 = vst.msk [vmem:[#allocation2] sm:$0xff] %vm196, -inf
        %198 = vst.msk [vmem:[#allocation2 + $0x8] sm:$0xff] %vm196, -inf
        %199 = vst.msk [vmem:[#allocation2 + $0x10] sm:$0xff] %vm196, -inf
        %200 = vst.msk [vmem:[#allocation2 + $0x18] sm:$0xff] %vm196, -inf
        %201 = vst.msk [vmem:[#allocation3] sm:$0xff] %vm196, 0.0
        %202 = vst.msk [vmem:[#allocation3 + $0x8] sm:$0xff] %vm196, 0.0
        %203 = vst.msk [vmem:[#allocation3 + $0x10] sm:$0xff] %vm196, 0.0
        %204 = vst.msk [vmem:[#allocation3 + $0x18] sm:$0xff] %vm196, 0.0
        %205 = vst.msk [vmem:[#allocation4] sm:$0xff] %vm196, 0.0
        %206 = vst.msk [vmem:[#allocation4 + $0x8] sm:$0xff] %vm196, 0.0
        %207 = vst.msk [vmem:[#allocation4 + $0x10] sm:$0xff] %vm196, 0.0
        %208 = vst.msk [vmem:[#allocation4 + $0x18] sm:$0xff] %vm196, 0.0
      $region32: #{tpu_custom_call.1} parent=27 // pred_fallthru
        _
      %v209 = vld [vmem:[%s184] sm:$0xff]
      %v210 = vld [vmem:[%s184 + $0x8] sm:$0xff]
      %v211 = vld [vmem:[%s184 + $0x10] sm:$0xff]
      %v212 = vld [vmem:[%s184 + $0x18] sm:$0xff]
      %v213 = vld [vmem:[%s175] sm:$0xff]
      %v214 = vld [vmem:[%s175 + $0x8] sm:$0xff]
      %v215 = vld [vmem:[%s175 + $0x10] sm:$0xff]
      %v216 = vld [vmem:[%s175 + $0x18] sm:$0xff]
      %v217 = vlaneseq
      %v218 = vand.u32 %v217, 127
      %s219 = smul.u32 %s18, 16
      %v220 = vstv %s219
      %v221 = vadd.s32 %v218, %v220
      %222 = vset.pattern.permute.xlu0 0
      %223 = vperm.xlu0 %222, %v213
      %v224 = vpop.permute.xlu0 %223
      %225 = vset.pattern.permute.xlu0 0
      %226 = vperm.xlu0 %225, %v214
      %v227 = vpop.permute.xlu0 %226
      %228 = vset.pattern.permute.xlu0 0
      %229 = vperm.xlu0 %228, %v215
      %v230 = vpop.permute.xlu0 %229
      %231 = vset.pattern.permute.xlu0 0
      %232 = vperm.xlu0 %231, %v216
      %v233 = vpop.permute.xlu0 %232
      %vm234 = vcmp.eq.s32.totalorder %v221, %v224
      %vm235 = vcmp.eq.s32.totalorder %v221, %v227
      %vm236 = vcmp.eq.s32.totalorder %v221, %v230
      %vm237 = vcmp.eq.s32.totalorder %v221, %v233
      %v238 = vsel %vm234, 0.8, 0.013333334
      %v239 = vsel %vm235, 0.8, 0.013333334
      %v240 = vsel %vm236, 0.8, 0.013333334
      %v241 = vsel %vm237, 0.8, 0.013333334
      %vm242 = vcmask 130048
      %v243 = vsel %vm242, %v209, -inf
      %244 = vmax.xlane.f32.xlu0 %v243
      %v245 = vpop.xlane.xlu0 %244
      %v246 = vsel %vm242, %v210, -inf
      %247 = vmax.xlane.f32.xlu0 %v246
      %v248 = vpop.xlane.xlu0 %247
      %v249 = vsel %vm242, %v211, -inf
      %250 = vmax.xlane.f32.xlu0 %v249
      %v251 = vpop.xlane.xlu0 %250
      %v252 = vsel %vm242, %v212, -inf
      %253 = vmax.xlane.f32.xlu0 %v252
      %v254 = vpop.xlane.xlu0 %253
      %v255 = vld [vmem:[#allocation2] sm:$0xff]
      %v256 = vld [vmem:[#allocation2 + $0x8] sm:$0xff]
      %v257 = vld [vmem:[#allocation2 + $0x10] sm:$0xff]
      %v258 = vld [vmem:[#allocation2 + $0x18] sm:$0xff]
      %v259 = vmax.f32 %v255, %v245
      %v260 = vmax.f32 %v256, %v248
      %v261 = vmax.f32 %v257, %v251
      %v262 = vmax.f32 %v258, %v254
      %264 = vset.pattern.permute.xlu0 0
      %265 = vperm.xlu0 %264, %v259
      %v266 = vpop.permute.xlu0 %265
      %269 = vset.pattern.permute.xlu0 0
      %270 = vperm.xlu0 %269, %v260
      %v271 = vpop.permute.xlu0 %270
      %274 = vset.pattern.permute.xlu0 0
      %275 = vperm.xlu0 %274, %v261
      %v276 = vpop.permute.xlu0 %275
      %279 = vset.pattern.permute.xlu0 0
      %280 = vperm.xlu0 %279, %v262
      %v281 = vpop.permute.xlu0 %280
      %v283 = vsub.f32 %v209, %v266
      %v284 = vsub.f32 %v210, %v271
      %v285 = vsub.f32 %v211, %v276
      %v286 = vsub.f32 %v212, %v281
      %v287 = vmul.f32 %v283, 1.442695
      %v288 = vpow.pop %v287
      %v289 = vmul.f32 %v284, 1.442695
      %v290 = vpow.pop %v289
      %v291 = vmul.f32 %v285, 1.442695
      %v292 = vpow.pop %v291
      %v293 = vmul.f32 %v286, 1.442695
      %v294 = vpow.pop %v293
      %v295 = vsel %vm242, %v288, 0.0
      %296 = vadd.xlane.f32.xlu0 %v295
      %v297 = vpop.xlane.xlu0 %296
      %v298 = vsel %vm242, %v290, 0.0
      %299 = vadd.xlane.f32.xlu0 %v298
      %v300 = vpop.xlane.xlu0 %299
      %v301 = vsel %vm242, %v292, 0.0
      %302 = vadd.xlane.f32.xlu0 %v301
      %v303 = vpop.xlane.xlu0 %302
      %v304 = vsel %vm242, %v294, 0.0
      %305 = vadd.xlane.f32.xlu0 %v304
      %v306 = vpop.xlane.xlu0 %305
      %v307 = vmul.f32 %v238, %v209
      %v308 = vmul.f32 %v239, %v210
      %v309 = vmul.f32 %v240, %v211
      %v310 = vmul.f32 %v241, %v212
      %v311 = vsel %vm242, %v307, 0.0
      %312 = vadd.xlane.f32.xlu0 %v311
      %v313 = vpop.xlane.xlu0 %312
      %v314 = vsel %vm242, %v308, 0.0
      %315 = vadd.xlane.f32.xlu0 %v314
      %v316 = vpop.xlane.xlu0 %315
      %v317 = vsel %vm242, %v309, 0.0
      %318 = vadd.xlane.f32.xlu0 %v317
      %v319 = vpop.xlane.xlu0 %318
      %v320 = vsel %vm242, %v310, 0.0
      %321 = vadd.xlane.f32.xlu0 %v320
      %v322 = vpop.xlane.xlu0 %321
      %v323 = vsub.f32 %v255, %v259
      %v324 = vsub.f32 %v256, %v260
      %v325 = vsub.f32 %v257, %v261
      %v326 = vsub.f32 %v258, %v262
      %v327 = vmul.f32 %v323, 1.442695
      %v328 = vpow.pop %v327
      %v329 = vmul.f32 %v324, 1.442695
      %v330 = vpow.pop %v329
      %v331 = vmul.f32 %v325, 1.442695
      %v332 = vpow.pop %v331
      %v333 = vmul.f32 %v326, 1.442695
      %v334 = vpow.pop %v333
      %v335 = vld [vmem:[#allocation3] sm:$0xff]
      %v336 = vld [vmem:[#allocation3 + $0x8] sm:$0xff]
      %v337 = vld [vmem:[#allocation3 + $0x10] sm:$0xff]
      %v338 = vld [vmem:[#allocation3 + $0x18] sm:$0xff]
      %v339 = vmul.f32 %v328, %v335
      %v340 = vmul.f32 %v330, %v336
      %v341 = vmul.f32 %v332, %v337
      %v342 = vmul.f32 %v334, %v338
      %v343 = vadd.f32 %v339, %v297
      %v344 = vadd.f32 %v340, %v300
      %v345 = vadd.f32 %v341, %v303
      %v346 = vadd.f32 %v342, %v306
      %vm347 = vcmask 7168
      %348 = vst.msk [vmem:[#allocation3] sm:$0xff] %vm347, %v343
      %349 = vst.msk [vmem:[#allocation3 + $0x8] sm:$0xff] %vm347, %v344
      %350 = vst.msk [vmem:[#allocation3 + $0x10] sm:$0xff] %vm347, %v345
      %351 = vst.msk [vmem:[#allocation3 + $0x18] sm:$0xff] %vm347, %v346
      %v352 = vld [vmem:[#allocation4] sm:$0xff]
      %v353 = vld [vmem:[#allocation4 + $0x8] sm:$0xff]
      %v354 = vld [vmem:[#allocation4 + $0x10] sm:$0xff]
      %v355 = vld [vmem:[#allocation4 + $0x18] sm:$0xff]
      %v356 = vadd.f32 %v352, %v313
      %v357 = vadd.f32 %v353, %v316
      %v358 = vadd.f32 %v354, %v319
      %v359 = vadd.f32 %v355, %v322
      %360 = vst.msk [vmem:[#allocation4] sm:$0xff] %vm347, %v356
      %361 = vst.msk [vmem:[#allocation4 + $0x8] sm:$0xff] %vm347, %v357
      %362 = vst.msk [vmem:[#allocation4 + $0x10] sm:$0xff] %vm347, %v358
      %363 = vst.msk [vmem:[#allocation4 + $0x18] sm:$0xff] %vm347, %v359
      %364 = vst.msk [vmem:[#allocation2] sm:$0xff] %vm347, %v259
      %365 = vst.msk [vmem:[#allocation2 + $0x8] sm:$0xff] %vm347, %v260
      %366 = vst.msk [vmem:[#allocation2 + $0x10] sm:$0xff] %vm347, %v261
      %367 = vst.msk [vmem:[#allocation2 + $0x18] sm:$0xff] %vm347, %v262
      // Predicated region
      $region33: #{tpu_custom_call.1} parent=27 // pred_check
        %p368 = pneg %p192
      $region34: #{tpu_custom_call.1} parent=27 // pred_check_branch
        %370 = sbr.rel (%p368) target = $region36
      $region35: #{tpu_custom_call.1} parent=27 // pred_region
        %v371 = vld [vmem:[#allocation2] sm:$0xff]
        %v372 = vld [vmem:[#allocation2 + $0x8] sm:$0xff]
        %v373 = vld [vmem:[#allocation2 + $0x10] sm:$0xff]
        %v374 = vld [vmem:[#allocation2 + $0x18] sm:$0xff]
        %v375 = vld [vmem:[#allocation3] sm:$0xff]
        %v376 = vld [vmem:[#allocation3 + $0x8] sm:$0xff]
        %v377 = vld [vmem:[#allocation3 + $0x10] sm:$0xff]
        %v378 = vld [vmem:[#allocation3 + $0x18] sm:$0xff]
        %v379 = vlog2.pop %v375
        %v380 = vmul.f32 %v379, 0.6931472
        %v381 = vlog2.pop %v376
        %v382 = vmul.f32 %v381, 0.6931472
        %v383 = vlog2.pop %v377
        %v384 = vmul.f32 %v383, 0.6931472
        %v385 = vlog2.pop %v378
        %v386 = vmul.f32 %v385, 0.6931472
        %v387 = vadd.f32 %v371, %v380
        %v388 = vadd.f32 %v372, %v382
        %v389 = vadd.f32 %v373, %v384
        %v390 = vadd.f32 %v374, %v386
        %v391 = vld [vmem:[#allocation4] sm:$0xff]
        %v392 = vld [vmem:[#allocation4 + $0x8] sm:$0xff]
        %v393 = vld [vmem:[#allocation4 + $0x10] sm:$0xff]
        %v394 = vld [vmem:[#allocation4 + $0x18] sm:$0xff]
        %v395 = vsub.f32 %v387, %v391
        %v396 = vsub.f32 %v388, %v392
        %v397 = vsub.f32 %v389, %v393
        %v398 = vsub.f32 %v390, %v394
        %v399 = vlaneseq
        %v400 = vshrl.u32 %v399, 7
        %v401 = vadd.s32 %v400, 8
        %v402 = vadd.s32 %v400, 16
        %v403 = vadd.s32 %v400, 24
        %s404 = smul.u32 %s17, 32
        %v405 = vstv %s404
        %v406 = vadd.s32 %v400, %v405
        %v407 = vadd.s32 %v401, %v405
        %v408 = vadd.s32 %v402, %v405
        %v409 = vadd.s32 %v403, %v405
        %vm410 = vcmp.lt.s32.totalorder %v406, 64
        %vm411 = vcmp.lt.s32.totalorder %v407, 64
        %vm412 = vcmp.lt.s32.totalorder %v408, 64
        %vm413 = vcmp.lt.s32.totalorder %v409, 64
        %v414 = vsel %vm410, %v395, 0.0
        %v415 = vsel %vm411, %v396, 0.0
        %v416 = vsel %vm412, %v397, 0.0
        %v417 = vsel %vm413, %v398, 0.0
        %418 = vst.msk [vmem:[%s190] sm:$0xff] %vm347, %v414
        %419 = vst.msk [vmem:[%s190 + $0x8] sm:$0xff] %vm347, %v415
        %420 = vst.msk [vmem:[%s190 + $0x10] sm:$0xff] %vm347, %v416
        %421 = vst.msk [vmem:[%s190 + $0x18] sm:$0xff] %vm347, %v417
      $region36: #{tpu_custom_call.1} parent=27 // pred_fallthru
        _
      %s422 = smul.u32 4, %s17
      %p423 = scmp.lt.s32.totalorder %s422, 7
      %s424 = scalar_select %p423, %s422, 7
      %s425 = smul.addr %s424, 8
      %s426 = scalar_lea.vmem %s2, %s425
      // Predicated region
      $region37: #{tpu_custom_call.1} parent=27 // pred_check
        %p427 = pneg %p97
      $region38: #{tpu_custom_call.1} parent=27 // pred_check_branch
        %429 = sbr.rel (%p427) target = $region40
      $region39: #{tpu_custom_call.1} parent=27 // pred_region
        %s430 = smul.u32 4, %s17
      $region40: #{tpu_custom_call.1} parent=27 // pred_fallthru
        _
    $region28: #{tpu_custom_call.1} parent=5 // pred_fallthru
      _
    %p431 = scmp.le.s32.totalorder 2, %s8
    // Predicated region
    $region41: #{tpu_custom_call.1} parent=5 // pred_check
      %p432 = pneg %p431
    $region42: #{tpu_custom_call.1} parent=5 // pred_check_branch
      %434 = sbr.rel (%p432) target = $region44
    $region43: #{tpu_custom_call.1} parent=5 // pred_region
      %s435 = ssub.s32 %s8, 2
      // Predicated region
      $region45: #{tpu_custom_call.1} parent=43 // pred_check
        %p436 = pneg %p103
      $region46: #{tpu_custom_call.1} parent=43 // pred_check_branch
        %438 = sbr.rel (%p436) target = $region48
      $region47: #{tpu_custom_call.1} parent=43 // pred_region
        %s439 = smul.u32 4, %s19
        %p440 = scmp.lt.s32.totalorder %s439, 7
        %s441 = scalar_select %p440, %s439, 7
        %s442 = smul.addr %s441, 8
        %s443 = scalar_lea.vmem %s2, %s442
      $region48: #{tpu_custom_call.1} parent=43 // pred_fallthru
        _
    $region44: #{tpu_custom_call.1} parent=5 // pred_fallthru
      _
  $region6: #{tpu_custom_call.1} parent=0 // loop_footer
    %s12 = sadd.s32 1, %s8
  $region7: #{tpu_custom_call.1} parent=0 // loop_footer_branch
    %7 = sbr.rel target = $region3
  $region8: #{tpu_custom_call.1} parent=0 // loop_exit
    _

</llo_original>
